<compile_context>
chip_gen: v7x
topology: tpu7x:2x2x1
jax: 0.10.0
libtpu: 0.0.40
codegen_flags: <defaults>
</compile_context>

<pallas_src>
import jax
import jax.numpy as jnp
from jax.experimental import pallas as pl
from jax.experimental.pallas import tpu as pltpu


def _round_up(n, m):
    return ((n + m - 1) // m) * m


def _choose_tile_b(B, tile_b_max):
    """Batch tile (multiple of 128).  Once B > 128 keep the grid at >=2 steps so
    the 'parallel' batch axis can split across v7x's two TensorCores."""
    b_pad_min = _round_up(B, 128)
    if b_pad_min <= 128:
        return 128, 128
    half = _round_up(pl.cdiv(b_pad_min, 2), 128)
    tile_b = min(_round_up(tile_b_max, 128), half)
    b_pad = _round_up(B, tile_b)
    return tile_b, b_pad


def policy_logprobs_kernel(xt_ref, w1_ref, b1_ref, w2_ref, b2_ref, out_ref):
    # xt: (S, TILE_B) -- batch on the lane axis (lane-dense load).
    xt = xt_ref[...]

    # fc1 + ReLU:  (H, S) @ (S, TILE_B) -> (H, TILE_B), f32 accumulation.
    # NOTE: K=4 contraction barely uses the MXU; could be rewritten as 4 VPU
    # broadcast-FMAs for the single-tile latency case, but the workload is
    # DMA-bound at large tiles so jnp.dot is kept (verify via bundle dump first).
    h = jnp.dot(w1_ref[...], xt, preferred_element_type=jnp.float32)
    h = jnp.maximum(h + b1_ref[...], 0.0)          # b1: (H, 1) broadcasts over lanes

    # fc2:  (A, H) @ (H, TILE_B) -> (A, TILE_B), f32 accumulation.
    h = h.astype(w2_ref.dtype)                     # bf16 keeps MXU rate; no-op for f32
    logits = jnp.dot(w2_ref[...], h, preferred_element_type=jnp.float32)
    logits = logits + b2_ref[...]                  # b2: (A, 1)

    # Numerically-stable log-softmax over the action axis (axis 0, transposed layout).
    # exp/log run on the EUP slot; exact normalization (no approx reciprocal).
    m = jnp.max(logits, axis=0, keepdims=True)
    shifted = logits - m
    lse = jnp.log(jnp.sum(jnp.exp(shifted), axis=0, keepdims=True))
    out_ref[...] = (shifted - lse).astype(out_ref.dtype)


def policy_logprobs_t(xt, w1, b1, w2, b2, *, input_dtype=jnp.bfloat16, tile_b_max=8192):
    """Feature-major core path (no wrapper transposes).

    xt: (s_size, B); w1: (H, S); b1: (H,); w2: (A, H); b2: (A,).
    Returns log-probs, shape (a_size, B), float32.
    """
    S, B = xt.shape
    H = w1.shape[0]
    A = w2.shape[0]

    tile_b, b_pad = _choose_tile_b(B, tile_b_max)
    n_tiles = b_pad // tile_b

    if b_pad != B:
        # Zero columns -> relu(b1) -> finite log-probs; padded columns sliced off below.
        xt = jnp.pad(xt, ((0, 0), (0, b_pad - B)))
    xt = xt.astype(input_dtype)                     # (S, b_pad), lane-dense
    w1c = w1.astype(input_dtype)                    # (H, S)
    w2c = w2.astype(input_dtype)                    # (A, H)
    b1c = b1.reshape(H, 1).astype(jnp.float32)      # (H, 1)
    b2c = b2.reshape(A, 1).astype(jnp.float32)      # (A, 1)

    out_t = pl.pallas_call(
        policy_logprobs_kernel,
        out_shape=jax.ShapeDtypeStruct((A, b_pad), jnp.float32),
        grid=(n_tiles,),
        in_specs=[
            pl.BlockSpec((S, tile_b), lambda i: (0, i)),   # x tile (double-buffered)
            pl.BlockSpec((H, S), lambda i: (0, 0)),        # W1 resident
            pl.BlockSpec((H, 1), lambda i: (0, 0)),        # b1 resident
            pl.BlockSpec((A, H), lambda i: (0, 0)),        # W2 resident
            pl.BlockSpec((A, 1), lambda i: (0, 0)),        # b2 resident
        ],
        out_specs=pl.BlockSpec((A, tile_b), lambda i: (0, i)),
        compiler_params=pltpu.CompilerParams(
            dimension_semantics=("parallel",),             # v7x: batch across 2 TCs
        ),
    )(xt, w1c, b1c, w2c, b2c)

    return out_t[:, :B] if b_pad != B else out_t


def policy_forward(x, w1, b1, w2, b2, *, input_dtype=jnp.bfloat16, tile_b_max=8192,
                   return_probs=False):
    """Row-major convenience wrapper.  x: (B, s_size).

    Returns log-probs (B, a_size) f32 by default (Categorical(logits=log_probs) is
    equivalent to the module's Categorical(probs)); set return_probs=True for probs.
    NOTE: the transposes here are extra HBM passes; prefer policy_logprobs_t when
    the producer/consumer can live in the (feature, batch) layout.
    """
    lp = policy_logprobs_t(x.T, w1, b1, w2, b2,
                           input_dtype=input_dtype, tile_b_max=tile_b_max).T
    return jnp.exp(lp) if return_probs else lp


def init_policy_params(key, s_size, h_size, a_size):
    """nn.Linear-style U(-1/sqrt(fan_in), 1/sqrt(fan_in)) init, PyTorch layout."""
    k1, k2, k3, k4 = jax.random.split(key, 4)
    lim1 = 1.0 / jnp.sqrt(jnp.float32(s_size))
    lim2 = 1.0 / jnp.sqrt(jnp.float32(h_size))
    w1 = jax.random.uniform(k1, (h_size, s_size), jnp.float32, -lim1, lim1)
    b1 = jax.random.uniform(k2, (h_size,), jnp.float32, -lim1, lim1)
    w2 = jax.random.uniform(k3, (a_size, h_size), jnp.float32, -lim2, lim2)
    b2 = jax.random.uniform(k4, (a_size,), jnp.float32, -lim2, lim2)
    return w1, b1, w2, b2


if __name__ == "__main__":
    # Small shapes consistent with the module: state dim 4, hidden 32, 4 actions.
    B, S, H, A = 2, 4, 32, 4
    key = jax.random.PRNGKey(0)
    kx, kp, kx2 = jax.random.split(key, 3)
    x = jax.random.normal(kx, (B, S), jnp.float32)
    w1, b1, w2, b2 = init_policy_params(kp, S, H, A)

    def ref_logprobs(xv):
        h = jnp.maximum(xv @ w1.T + b1, 0.0)
        return jax.nn.log_softmax(h @ w2.T + b2, axis=1)

    # f32 path (exact): tight tolerance.
    lp_f32 = jax.block_until_ready(
        policy_forward(x, w1, b1, w2, b2, input_dtype=jnp.float32))
    assert lp_f32.shape == (B, A)
    assert jnp.allclose(lp_f32, ref_logprobs(x), atol=1e-5), "mismatch vs reference (f32)"
    assert jnp.allclose(jnp.sum(jnp.exp(lp_f32), axis=1), 1.0, atol=1e-5)

    # Default bf16 inputs/weights, f32 accumulate + log-softmax.
    lp = jax.block_until_ready(policy_forward(x, w1, b1, w2, b2))
    assert jnp.allclose(jnp.exp(lp), jnp.exp(ref_logprobs(x)), atol=2e-2), "mismatch (bf16)"

    # Feature-major end-to-end path (no wrapper transposes).
    lp_t = jax.block_until_ready(policy_logprobs_t(x.T, w1, b1, w2, b2))
    assert lp_t.shape == (A, B)
    assert jnp.allclose(lp_t, lp.T), "transposed path disagrees with row-major path"

    # Multi-tile grid path (B not a multiple of the batch tile) to exercise
    # padding + the >=2-step pipelined/parallel batch grid.
    x_big = jax.random.normal(kx2, (700, S), jnp.float32)
    lp_big = jax.block_until_ready(policy_forward(x_big, w1, b1, w2, b2))
    assert lp_big.shape == (700, A)
    assert jnp.allclose(jnp.exp(lp_big), jnp.exp(ref_logprobs(x_big)), atol=2e-2), "mismatch (tiled)"

    # Host-side "Categorical" glue: sample + log_prob straight from kernel log-probs
    # (jax.random.categorical takes logits/log-probs; no jnp.log pass, no log(0)).
    action = jax.random.categorical(jax.random.PRNGKey(1), lp)
    _ = lp[jnp.arange(B), action]  # m.log_prob(action)

    print("KERNEL_OK")
</pallas_src>

<mosaic_0001>
module attributes {stable_mosaic.version = 11 : i64} {
  func.func @policy_logprobs_kernel(%arg0: i32, %arg1: memref<4x128xf32, #tpu.memory_space<vmem>>, %arg2: memref<32x4xf32, #tpu.memory_space<vmem>>, %arg3: memref<32x1xf32, #tpu.memory_space<vmem>>, %arg4: memref<4x32xf32, #tpu.memory_space<vmem>>, %arg5: memref<4x1xf32, #tpu.memory_space<vmem>>, %arg6: memref<4x128xf32, #tpu.memory_space<vmem>>) attributes {dimension_semantics = [#tpu.dimension_semantics<parallel>], iteration_bounds = array<i64: 1>, scalar_prefetch = 0 : i64, scratch_operands = 0 : i64, tpu.core_type = #tpu.core_type<tc>, window_params = [{transform_indices = @transform_0, window_bounds = array<i64: 4, 128>}, {pipeline_mode = #tpu.pipeline_mode<synchronous>, transform_indices = @transform_1, window_bounds = array<i64: 32, 4>}, {pipeline_mode = #tpu.pipeline_mode<synchronous>, transform_indices = @transform_2, window_bounds = array<i64: 32, 1>}, {pipeline_mode = #tpu.pipeline_mode<synchronous>, transform_indices = @transform_3, window_bounds = array<i64: 4, 32>}, {pipeline_mode = #tpu.pipeline_mode<synchronous>, transform_indices = @transform_4, window_bounds = array<i64: 4, 1>}, {transform_indices = @transform_5, window_bounds = array<i64: 4, 128>}]} {
    %c0 = arith.constant 0 : index
    %c0_0 = arith.constant 0 : index
    %0 = vector.load %arg1[%c0, %c0_0] : memref<4x128xf32, #tpu.memory_space<vmem>>, vector<4x128xf32>
    %c0_1 = arith.constant 0 : index
    %c0_2 = arith.constant 0 : index
    %1 = vector.load %arg2[%c0_1, %c0_2] : memref<32x4xf32, #tpu.memory_space<vmem>>, vector<32x4xf32>
    %cst = arith.constant dense<0.000000e+00> : vector<32x128xf32>
    %2 = tpu.matmul %1, %0, %cst {dimension_numbers = #tpu.dot_dimension_numbers<[1], [0], [0], [1], [0, 0, 1, 1], [], []>} : vector<32x4xf32>, vector<4x128xf32>, vector<32x128xf32> -> vector<32x128xf32>
    %c0_3 = arith.constant 0 : index
    %c0_4 = arith.constant 0 : index
    %3 = vector.load %arg3[%c0_3, %c0_4] : memref<32x1xf32, #tpu.memory_space<vmem>>, vector<32x1xf32>
    %4 = vector.broadcast %3 : vector<32x1xf32> to vector<32x128xf32>
    %5 = arith.addf %2, %4 : vector<32x128xf32>
    %cst_5 = arith.constant 0.000000e+00 : f32
    %6 = vector.broadcast %cst_5 : f32 to vector<32x128xf32>
    %7 = arith.maximumf %5, %6 : vector<32x128xf32>
    %c0_6 = arith.constant 0 : index
    %c0_7 = arith.constant 0 : index
    %8 = vector.load %arg4[%c0_6, %c0_7] : memref<4x32xf32, #tpu.memory_space<vmem>>, vector<4x32xf32>
    %cst_8 = arith.constant dense<0.000000e+00> : vector<4x128xf32>
    %9 = tpu.matmul %8, %7, %cst_8 {dimension_numbers = #tpu.dot_dimension_numbers<[1], [0], [0], [1], [0, 0, 1, 1], [], []>} : vector<4x32xf32>, vector<32x128xf32>, vector<4x128xf32> -> vector<4x128xf32>
    %c0_9 = arith.constant 0 : index
    %c0_10 = arith.constant 0 : index
    %10 = vector.load %arg5[%c0_9, %c0_10] : memref<4x1xf32, #tpu.memory_space<vmem>>, vector<4x1xf32>
    %11 = vector.broadcast %10 : vector<4x1xf32> to vector<4x128xf32>
    %12 = arith.addf %9, %11 : vector<4x128xf32>
    %cst_11 = arith.constant dense<0xFF800000> : vector<128xf32>
    %13 = vector.multi_reduction <maximumf>, %12, %cst_11 [0] : vector<4x128xf32> to vector<128xf32>
    %14 = vector.shape_cast %13 : vector<128xf32> to vector<1x128xf32>
    %15 = vector.broadcast %14 : vector<1x128xf32> to vector<4x128xf32>
    %16 = arith.subf %12, %15 : vector<4x128xf32>
    %17 = math.exp %16 : vector<4x128xf32>
    %cst_12 = arith.constant dense<0.000000e+00> : vector<128xf32>
    %18 = vector.multi_reduction <add>, %17, %cst_12 [0] : vector<4x128xf32> to vector<128xf32>
    %19 = vector.shape_cast %18 : vector<128xf32> to vector<1x128xf32>
    %20 = math.log %19 : vector<1x128xf32>
    %21 = vector.broadcast %20 : vector<1x128xf32> to vector<4x128xf32>
    %22 = arith.subf %16, %21 : vector<4x128xf32>
    %c0_13 = arith.constant 0 : index
    %c0_14 = arith.constant 0 : index
    %23 = vector.load %arg6[%c0_13, %c0_14] : memref<4x128xf32, #tpu.memory_space<vmem>>, vector<4x128xf32>
    tpu.vector_store %arg6[%c0_13, %c0_14], %22 {strides = array<i32>} : memref<4x128xf32, #tpu.memory_space<vmem>>, vector<4x128xf32>,
    return
  }
  func.func @transform_0(%arg0: i32) -> (i32, i32) {
    %c0_i32 = arith.constant 0 : i32
    %c0_i32_0 = arith.constant 0 : i32
    return %c0_i32, %arg0 : i32, i32
  }
  func.func @transform_1(%arg0: i32) -> (i32, i32) {
    %c0_i32 = arith.constant 0 : i32
    %c0_i32_0 = arith.constant 0 : i32
    %c0_i32_1 = arith.constant 0 : i32
    return %c0_i32, %c0_i32_0 : i32, i32
  }
  func.func @transform_2(%arg0: i32) -> (i32, i32) {
    %c0_i32 = arith.constant 0 : i32
    %c0_i32_0 = arith.constant 0 : i32
    %c0_i32_1 = arith.constant 0 : i32
    return %c0_i32, %c0_i32_0 : i32, i32
  }
  func.func @transform_3(%arg0: i32) -> (i32, i32) {
    %c0_i32 = arith.constant 0 : i32
    %c0_i32_0 = arith.constant 0 : i32
    %c0_i32_1 = arith.constant 0 : i32
    return %c0_i32, %c0_i32_0 : i32, i32
  }
  func.func @transform_4(%arg0: i32) -> (i32, i32) {
    %c0_i32 = arith.constant 0 : i32
    %c0_i32_0 = arith.constant 0 : i32
    %c0_i32_1 = arith.constant 0 : i32
    return %c0_i32, %c0_i32_0 : i32, i32
  }
  func.func @transform_5(%arg0: i32) -> (i32, i32) {
    %c0_i32 = arith.constant 0 : i32
    %c0_i32_0 = arith.constant 0 : i32
    return %c0_i32, %arg0 : i32, i32
  }
}

</mosaic_0001>

<llo_original>
// kernel: tpu_custom_call.1
$region0: #{tpu_custom_call.1}
  #allocation0 [shape = 'u32[]', space=smem, size = 0x4, offset = 0x4, fixed_abs, tag = 'smem constant byte address 0x4 - core index']
  #allocation1 [shape = 'u32[144,128]{1,0:T(1,128)}', space=vmem, size = 0x12000, scoped, tag = 'internal scratch']
  %s0 = inlined_call_operand.vmem [shape: f32[4,128], index: 0, kind: input, shape index: {}]
  %s1 = inlined_call_operand.vmem [shape: f32[32,4], index: 1, kind: input, shape index: {}]
  %s2 = inlined_call_operand.vmem [shape: f32[32,1], index: 2, kind: input, shape index: {}]
  %s3 = inlined_call_operand.vmem [shape: f32[4,32], index: 3, kind: input, shape index: {}]
  %s4 = inlined_call_operand.vmem [shape: f32[4,1], index: 4, kind: input, shape index: {}]
  %s5 = inlined_call_operand.hbm [shape: f32[4,128], index: 5, kind: output, shape index: {}]
  %s6 = sld [smem:[#allocation0]]
  $region30: #{tpu_custom_call.1} parent=0
    _
  %s8 = ssub.s32 1, %s6
  %s9 = scalar_select 0, %s8, %s6
  $region1: #{tpu_custom_call.1} parent=0
    #allocation2 [shape = 'u8[2048]{0}', space=vmem, size = 0x800, scoped, tag = 'output window, operand 0, single buffered']
    #allocation3 [shape = 's32[1]{0}', space=sflag, size = 0x4, scoped, tag = 'scoped memory for tpu_custom_call.1']
    %10 = vsyncpa [#allocation3], 0
    // Predicated region
    $region2: #{tpu_custom_call.1} parent=1 // pred_check
      _
    $region3: #{tpu_custom_call.1} parent=1 // pred_check_branch
      %12 = sbr.rel (0) target = $region5
    $region4: #{tpu_custom_call.1} parent=1 // pred_region
      _
    $region5: #{tpu_custom_call.1} parent=1 // pred_fallthru
      _
    // Predicated region
    $region6: #{tpu_custom_call.1} parent=1 // pred_check
      _
    $region7: #{tpu_custom_call.1} parent=1 // pred_check_branch
      %14 = sbr.rel (0) target = $region9
    $region8: #{tpu_custom_call.1} parent=1 // pred_region
      _
    $region9: #{tpu_custom_call.1} parent=1 // pred_fallthru
      _
    // Predicated region
    $region10: #{tpu_custom_call.1} parent=1 // pred_check
      _
    $region11: #{tpu_custom_call.1} parent=1 // pred_check_branch
      %16 = sbr.rel (0) target = $region13
    $region12: #{tpu_custom_call.1} parent=1 // pred_region
      _
    $region13: #{tpu_custom_call.1} parent=1 // pred_fallthru
      _
    // Predicated region
    $region14: #{tpu_custom_call.1} parent=1 // pred_check
      _
    $region15: #{tpu_custom_call.1} parent=1 // pred_check_branch
      %18 = sbr.rel (0) target = $region17
    $region16: #{tpu_custom_call.1} parent=1 // pred_region
      _
    $region17: #{tpu_custom_call.1} parent=1 // pred_fallthru
      _
    // Predicated region
    $region18: #{tpu_custom_call.1} parent=1 // pred_check
      _
    $region19: #{tpu_custom_call.1} parent=1 // pred_check_branch
      %20 = sbr.rel (0) target = $region21
    $region20: #{tpu_custom_call.1} parent=1 // pred_region
      _
    $region21: #{tpu_custom_call.1} parent=1 // pred_fallthru
      _
    %v21 = vld [vmem:[%s0] sm:$0xf]
    %v22 = vld [vmem:[%s1] sm:$0xff]
    %v23 = vld [vmem:[%s1 + $0x8] sm:$0xff]
    %v24 = vld [vmem:[%s1 + $0x10] sm:$0xff]
    %v25 = vld [vmem:[%s1 + $0x18] sm:$0xff]
    %v26 = vld [vmem:[%s2] sm:$0xff]
    %v27 = vld [vmem:[%s2 + $0x8] sm:$0xff]
    %v28 = vld [vmem:[%s2 + $0x10] sm:$0xff]
    %v29 = vld [vmem:[%s2 + $0x18] sm:$0xff]
    %31 = vset.pattern.permute.xlu0 0
    %32 = vperm.xlu0 %31, %v26
    %v33 = vpop.permute.xlu0 %32
    %36 = vset.pattern.permute.xlu0 0
    %37 = vperm.xlu0 %36, %v27
    %v38 = vpop.permute.xlu0 %37
    %41 = vset.pattern.permute.xlu0 0
    %42 = vperm.xlu0 %41, %v28
    %v43 = vpop.permute.xlu0 %42
    %46 = vset.pattern.permute.xlu0 0
    %47 = vperm.xlu0 %46, %v29
    %v48 = vpop.permute.xlu0 %47
    %vm50 = vcmask 31744
    %v52 = vsel %vm50, %v22, 0
    %v55 = vsel %vm50, %v23, 0
    %v58 = vsel %vm50, %v24, 0
    %v61 = vsel %vm50, %v25, 0
    %vm63 = vcmask 1043456
    %v65 = vsel %vm63, %v21, 0
    %67 = vmatprep.subr.mxu0 0.0
    %68 = vmatpush1.msra.mxu0 %v65
    %69 = vmatprep.subr.mxu0 0.0
    %70 = vmatpush1.msra.mxu0 0.0
    %71 = vmatprep.subr.mxu0 0.0
    %72 = vmatpush1.msra.mxu0 0.0
    %73 = vmatprep.subr.mxu0 0.0
    %74 = vmatpush1.msra.mxu0 0.0
    %75 = vmatprep.subr.mxu0 0.0
    %76 = vmatpush1.msra.mxu0 0.0
    %77 = vmatprep.subr.mxu0 0.0
    %78 = vmatpush1.msra.mxu0 0.0
    %79 = vmatprep.subr.mxu0 0.0
    %80 = vmatpush1.msra.mxu0 0.0
    %81 = vmatprep.subr.mxu0 0.0
    %82 = vmatpush1.msra.mxu0 0.0
    %83 = vmatprep.subr.mxu0 0.0
    %84 = vmatpush1.msra.mxu0 0.0
    %85 = vmatprep.subr.mxu0 0.0
    %86 = vmatpush1.msra.mxu0 0.0
    %87 = vmatprep.subr.mxu0 0.0
    %88 = vmatpush1.msra.mxu0 0.0
    %89 = vmatprep.subr.mxu0 0.0
    %90 = vmatpush1.msra.mxu0 0.0
    %91 = vmatprep.subr.mxu0 0.0
    %92 = vmatpush1.msra.mxu0 0.0
    %93 = vmatprep.subr.mxu0 0.0
    %94 = vmatpush1.msra.mxu0 0.0
    %95 = vmatprep.subr.mxu0 0.0
    %96 = vmatpush1.msra.mxu0 0.0
    %97 = vmatprep.subr.mxu0 0.0
    %98 = vmatpush1.msra.mxu0 0.0
    %99 = vmatprep.subr.mxu0 0.0
    %100 = vmatpush1.msra.mxu0 0.0
    %101 = vmatprep.subr.mxu0 0.0
    %102 = vmatpush1.msra.mxu0 0.0
    %103 = vmatprep.subr.mxu0 0.0
    %104 = vmatpush1.msra.mxu0 0.0
    %105 = vmatprep.subr.mxu0 0.0
    %106 = vmatpush1.msra.mxu0 0.0
    %107 = vmatprep.subr.mxu0 0.0
    %108 = vmatpush1.msra.mxu0 0.0
    %109 = vmatprep.subr.mxu0 0.0
    %110 = vmatpush1.msra.mxu0 0.0
    %111 = vmatprep.subr.mxu0 0.0
    %112 = vmatpush1.msra.mxu0 0.0
    %113 = vmatprep.subr.mxu0 0.0
    %114 = vmatpush1.msra.mxu0 0.0
    %115 = vmatprep.subr.mxu0 0.0
    %116 = vmatpush1.msra.mxu0 0.0
    %117 = vmatprep.subr.mxu0 0.0
    %118 = vmatpush1.msra.mxu0 0.0
    %119 = vmatprep.subr.mxu0 0.0
    %120 = vmatpush1.msra.mxu0 0.0
    %121 = vmatprep.subr.mxu0 0.0
    %122 = vmatpush1.msra.mxu0 0.0
    %123 = vmatprep.subr.mxu0 0.0
    %124 = vmatpush1.msra.mxu0 0.0
    %125 = vmatprep.subr.mxu0 0.0
    %126 = vmatpush1.msra.mxu0 0.0
    %127 = vmatprep.subr.mxu0 0.0
    %128 = vmatpush1.msra.mxu0 0.0
    %129 = vmatprep.subr.mxu0 0.0
    %130 = vmatpush1.msra.mxu0 0.0
    %131 = vmatprep.mubr.f32.mxu0 0.0
    %132 = vmatmul.mubr.f32.gmra.mrb[0].mxu0 %v52
    %v133 = vpop.f32.mrb[0].mxu0
    %v134 = vadd.f32 %v33, %v133
    %v135 = vpop.f32.mrb[0].mxu0
    %136 = vmatprep.mubr.f32.mxu0 0.0
    %137 = vmatmul.mubr.f32.gmra.mrb[0].mxu0 %v55
    %v138 = vpop.f32.mrb[0].mxu0
    %v139 = vadd.f32 %v38, %v138
    %v140 = vpop.f32.mrb[0].mxu0
    %141 = vmatprep.mubr.f32.mxu0 0.0
    %142 = vmatmul.mubr.f32.gmra.mrb[0].mxu0 %v58
    %v143 = vpop.f32.mrb[0].mxu0
    %v144 = vadd.f32 %v43, %v143
    %v145 = vpop.f32.mrb[0].mxu0
    %146 = vmatprep.mubr.f32.mxu0 0.0
    %147 = vmatmul.mubr.f32.gmra.mrb[0].mxu0 %v61
    %v148 = vpop.f32.mrb[0].mxu0
    %v149 = vadd.f32 %v48, %v148
    %v150 = vpop.f32.mrb[0].mxu0
    %151 = vdwg.mxu0
    %v152 = vmax.f32 %v134, 0.0
    %v153 = vmax.f32 %v139, 0.0
    %v154 = vmax.f32 %v144, 0.0
    %v155 = vmax.f32 %v149, 0.0
    %v156 = vld [vmem:[%s3] sm:$0xf]
    %v157 = vld [vmem:[%s4] sm:$0xf]
    %159 = vset.pattern.permute.xlu0 0
    %160 = vperm.xlu0 %159, %v157
    %v161 = vpop.permute.xlu0 %160
    %vm163 = vcmask 261120
    %v165 = vsel %vm163, %v156, 0
    %167 = vmatprep.subr.mxu0 0.0
    %168 = vmatpush1.msra.mxu0 %v152
    %169 = vmatprep.subr.mxu0 0.0
    %170 = vmatpush1.msra.mxu0 %v153
    %171 = vmatprep.subr.mxu0 0.0
    %172 = vmatpush1.msra.mxu0 %v154
    %173 = vmatprep.subr.mxu0 0.0
    %174 = vmatpush1.msra.mxu0 %v155
    %175 = vmatprep.subr.mxu0 0.0
    %176 = vmatpush1.msra.mxu0 0.0
    %177 = vmatprep.subr.mxu0 0.0
    %178 = vmatpush1.msra.mxu0 0.0
    %179 = vmatprep.subr.mxu0 0.0
    %180 = vmatpush1.msra.mxu0 0.0
    %181 = vmatprep.subr.mxu0 0.0
    %182 = vmatpush1.msra.mxu0 0.0
    %183 = vmatprep.subr.mxu0 0.0
    %184 = vmatpush1.msra.mxu0 0.0
    %185 = vmatprep.subr.mxu0 0.0
    %186 = vmatpush1.msra.mxu0 0.0
    %187 = vmatprep.subr.mxu0 0.0
    %188 = vmatpush1.msra.mxu0 0.0
    %189 = vmatprep.subr.mxu0 0.0
    %190 = vmatpush1.msra.mxu0 0.0
    %191 = vmatprep.subr.mxu0 0.0
    %192 = vmatpush1.msra.mxu0 0.0
    %193 = vmatprep.subr.mxu0 0.0
    %194 = vmatpush1.msra.mxu0 0.0
    %195 = vmatprep.subr.mxu0 0.0
    %196 = vmatpush1.msra.mxu0 0.0
    %197 = vmatprep.subr.mxu0 0.0
    %198 = vmatpush1.msra.mxu0 0.0
    %199 = vmatprep.subr.mxu0 0.0
    %200 = vmatpush1.msra.mxu0 0.0
    %201 = vmatprep.subr.mxu0 0.0
    %202 = vmatpush1.msra.mxu0 0.0
    %203 = vmatprep.subr.mxu0 0.0
    %204 = vmatpush1.msra.mxu0 0.0
    %205 = vmatprep.subr.mxu0 0.0
    %206 = vmatpush1.msra.mxu0 0.0
    %207 = vmatprep.subr.mxu0 0.0
    %208 = vmatpush1.msra.mxu0 0.0
    %209 = vmatprep.subr.mxu0 0.0
    %210 = vmatpush1.msra.mxu0 0.0
    %211 = vmatprep.subr.mxu0 0.0
    %212 = vmatpush1.msra.mxu0 0.0
    %213 = vmatprep.subr.mxu0 0.0
    %214 = vmatpush1.msra.mxu0 0.0
    %215 = vmatprep.subr.mxu0 0.0
    %216 = vmatpush1.msra.mxu0 0.0
    %217 = vmatprep.subr.mxu0 0.0
    %218 = vmatpush1.msra.mxu0 0.0
    %219 = vmatprep.subr.mxu0 0.0
    %220 = vmatpush1.msra.mxu0 0.0
    %221 = vmatprep.subr.mxu0 0.0
    %222 = vmatpush1.msra.mxu0 0.0
    %223 = vmatprep.subr.mxu0 0.0
    %224 = vmatpush1.msra.mxu0 0.0
    %225 = vmatprep.subr.mxu0 0.0
    %226 = vmatpush1.msra.mxu0 0.0
    %227 = vmatprep.subr.mxu0 0.0
    %228 = vmatpush1.msra.mxu0 0.0
    %229 = vmatprep.subr.mxu0 0.0
    %230 = vmatpush1.msra.mxu0 0.0
    %231 = vmatprep.mubr.f32.mxu0 0.0
    %232 = vmatmul.mubr.f32.gmra.mrb[0].mxu0 %v165
    %v233 = vpop.f32.mrb[0].mxu0
    %v234 = vadd.f32 %v161, %v233
    %v235 = vpop.f32.mrb[0].mxu0
    %236 = vdwg.mxu0
    %v237 = vsel %vm63, %v234, -inf
    %v238 = vrot.slane %v237, 4
    %v239 = vmax.f32 %v237, %v238
    %v240 = vrot.slane %v239, 2
    %v241 = vmax.f32 %v239, %v240
    %v242 = vrot.slane %v241, 1
    %v243 = vmax.f32 %v241, %v242
    %v244 = vsub.f32 %v234, %v243
    %v245 = vmul.f32 %v244, 1.442695
    %v246 = vpow.pop %v245
    %v247 = vsel %vm63, %v246, 0.0
    %v248 = vrot.slane %v247, 4
    %v249 = vadd.f32 %v247, %v248
    %v250 = vrot.slane %v249, 2
    %v251 = vadd.f32 %v249, %v250
    %v252 = vrot.slane %v251, 1
    %v253 = vadd.f32 %v251, %v252
    %v254 = vlog2.pop %v253
    %v255 = vmul.f32 %v254, 0.6931472
    %v256 = vsub.f32 %v244, %v255
    %257 = vst [vmem:[#allocation2] sm:$0xf] %v256
    // Predicated region
    $region22: #{tpu_custom_call.1} parent=1 // pred_check
      _
    $region23: #{tpu_custom_call.1} parent=1 // pred_check_branch
      %259 = sbr.rel (0) target = $region25
    $region24: #{tpu_custom_call.1} parent=1 // pred_region
      %s261 = ssub.s32 64, 64
      %262 = vsyncadd [#allocation3], %s261
      %s264 = sshll.u32 [#allocation2], 4
      %s265 = int_to_ptr.vmem [resolvable:$true] %s264
      %267 = dma.vmem_to_hbm [thread:$0]  %s265, 64, %s5, [#allocation3]
    $region25: #{tpu_custom_call.1} parent=1 // pred_fallthru
      _
    // Predicated region
    $region26: #{tpu_custom_call.1} parent=1 // pred_check
      _
    $region27: #{tpu_custom_call.1} parent=1 // pred_check_branch
      %269 = sbr.rel (0) target = $region29
    $region28: #{tpu_custom_call.1} parent=1 // pred_region
      %270 = dma.done [#allocation3], 64
    $region29: #{tpu_custom_call.1} parent=1 // pred_fallthru
      _
    %271 = vsyncpa [#allocation3], 1

</llo_original>
